<compile_context>
chip_gen: v7x
topology: tpu7x:2x2x1
jax: 0.10.0
libtpu: 0.0.40
codegen_flags: <defaults>
</compile_context>

<pallas_src>
import functools
import math

import jax
import jax.numpy as jnp
from jax.experimental import pallas as pl
from jax.experimental.pallas import tpu as pltpu

LANES = 128
TM_MAX_ROWS = 8192               # hard cap on rows per block
MAX_LANE = 32768                 # widest copy-free lane view before pad fallback
VMEM_BUDGET = 12 * 1024 * 1024   # 2x-buffered inputs stay < v5e 16 MiB default


# --------------------------------------------------------------------------
# Kernels
# --------------------------------------------------------------------------
def _mse_sum_kernel(*refs, tm, n_rows, steps, blocks,
                    has_weight, need_wsum, need_mask):
    """Accumulate sum(weight * (pred - target)^2) (and sum(weight)) per part."""
    if has_weight:
        pred_ref, targ_ref, w_ref = refs[0], refs[1], refs[2]
        rest = refs[3:]
    else:
        pred_ref, targ_ref = refs[0], refs[1]
        w_ref = None
        rest = refs[2:]
    out_ref, acc_ref = rest[0], rest[1]
    wacc_ref = rest[2] if need_wsum else None

    p = pl.program_id(0)   # partition axis ('parallel')
    i = pl.program_id(1)   # accumulation axis ('arbitrary')

    @pl.when(i == 0)
    def _init():
        acc_ref[...] = jnp.zeros_like(acc_ref)
        if need_wsum:
            wacc_ref[...] = jnp.zeros_like(wacc_ref)

    diff = pred_ref[...].astype(jnp.float32) - targ_ref[...].astype(jnp.float32)
    sq = diff * diff
    w = w_ref[...].astype(jnp.float32) if has_weight else None
    if has_weight:
        sq = sq * w

    def _accum(sq_v, w_v):
        # In-block sublane reduce -> (1, lane) partial; keeps the accumulator
        # tiny and the steady-state acc RMW to one vld/vst per lane group.
        acc_ref[...] += jnp.sum(sq_v, axis=0, keepdims=True)
        if need_wsum:
            wacc_ref[...] += jnp.sum(w_v, axis=0, keepdims=True)

    if need_mask:
        ragged_last = (n_rows % tm) != 0
        first_masked = (blocks - 1) if ragged_last else blocks
        blk = p * steps + i

        @pl.when(blk < first_masked)            # fast path: no mask
        def _fast():
            _accum(sq, w)

        @pl.when(blk >= first_masked)           # ragged last / duplicate block
        def _masked():
            row = blk * tm + jax.lax.broadcasted_iota(jnp.int32, sq.shape, 0)
            keep = row < n_rows
            sq_m = jnp.where(keep, sq, 0.0)
            w_m = jnp.where(keep, w, 0.0) if need_wsum else None
            _accum(sq_m, w_m)
    else:
        _accum(sq, w)

    @pl.when(i == pl.num_programs(1) - 1)
    def _finalize():
        out_ref[0, 0] = jnp.sum(acc_ref[...])   # single cross-lane reduce
        if need_wsum:
            out_ref[0, 1] = jnp.sum(wacc_ref[...])


def _mse_map_kernel(*refs, has_weight, loss_weight):
    """Element-wise loss_weight * weight * (pred - target)^2 (reduction='none')."""
    if has_weight:
        pred_ref, targ_ref, w_ref, out_ref = refs
    else:
        pred_ref, targ_ref, out_ref = refs
        w_ref = None
    diff = pred_ref[...].astype(jnp.float32) - targ_ref[...].astype(jnp.float32)
    res = diff * diff
    if has_weight:
        res = res * w_ref[...].astype(jnp.float32)
    if loss_weight != 1.0:
        res = res * jnp.float32(loss_weight)
    out_ref[...] = res.astype(out_ref.dtype)


# --------------------------------------------------------------------------
# Wrapper helpers
# --------------------------------------------------------------------------
def _view2d(shape):
    """Copy-free 2-D view (rows, lane), or None if only a pad fallback works."""
    n = math.prod(shape)
    if n % LANES == 0:
        return n // LANES, LANES                # lane-dense, free reshape
    lane = 1
    for d in reversed(shape):
        lane *= d
        if lane >= LANES:
            break
    if lane <= MAX_LANE:
        return n // lane, lane                  # block last dim == full dim
    return None


def _pad_lane_dense(x):
    flat = jnp.ravel(x)
    pad = (-flat.shape[0]) % LANES
    if pad:
        flat = jnp.pad(flat, (0, pad))          # zeros contribute 0 everywhere
    return flat.reshape(-1, LANES)


def _pick_tm(rows, lane, itemsizes, block_rows=None):
    """Rows per block so 2x-buffered inputs stay under the v5e scoped limit."""
    lane_pad = -(-lane // LANES) * LANES        # VMEM lane padding
    per_row = max(1, sum(itemsizes)) * lane_pad
    tm = (VMEM_BUDGET // (2 * per_row)) // 8 * 8
    tm = max(8, min(TM_MAX_ROWS, tm))
    if block_rows is not None:                  # test/tuning override
        tm = max(8, (block_rows // 8) * 8)
    if rows <= tm:
        return rows, 1                          # full-extent block, always legal
    return tm, -(-rows // tm)


# --------------------------------------------------------------------------
# Public entry point
# --------------------------------------------------------------------------
def mse_loss(pred, target, weight=None, reduction="mean", loss_weight=1.0,
             block_rows=None):
    """Pallas implementation of MSELoss.forward ('none' | 'mean' | 'sum')."""
    if reduction not in ("none", "mean", "sum"):
        raise ValueError(f"Unsupported reduction mode: {reduction}")
    assert pred.shape == target.shape, (pred.shape, target.shape)
    shape = pred.shape
    n_elem = math.prod(shape)

    has_weight = weight is not None
    weight_full = None
    if has_weight:
        # TODO(synk): DMA channel-1 weights through their own BlockSpec instead
        # of materializing the broadcast (extra HBM pass for non-full weights).
        weight_full = weight if weight.shape == shape else jnp.broadcast_to(weight, shape)

    out_dtype = jnp.promote_types(pred.dtype, target.dtype)
    if has_weight:
        out_dtype = jnp.promote_types(out_dtype, weight.dtype)

    if n_elem == 0:
        if reduction == "none":
            return jnp.zeros(shape, out_dtype)
        if reduction == "sum":
            return jnp.zeros((), out_dtype)
        return jnp.full((), jnp.nan, out_dtype)

    view = _view2d(shape)
    padded = view is None
    if padded:
        # TODO(synk): rare fallback (huge non-128-multiple trailing dim) — pads
        # with zeros, which costs an extra HBM pass over each input.
        pred2 = _pad_lane_dense(pred)
        targ2 = _pad_lane_dense(target)
        inputs = [pred2, targ2]
        if has_weight:
            inputs.append(_pad_lane_dense(weight_full))
        rows, lane = pred2.shape
    else:
        rows, lane = view
        pred2 = pred.reshape(rows, lane)        # free reshape, no copy
        targ2 = target.reshape(rows, lane)
        inputs = [pred2, targ2]
        if has_weight:
            inputs.append(weight_full.reshape(rows, lane))

    itemsizes = [x.dtype.itemsize for x in inputs]
    in_bytes = sum(int(x.size) * x.dtype.itemsize for x in inputs)
    flops = (3 if has_weight else 2) * n_elem + n_elem

    # ---------------- 'none': element-wise map ----------------
    if reduction == "none":
        out_isize = jnp.dtype(out_dtype).itemsize
        tm, blocks = _pick_tm(rows, lane, itemsizes + [out_isize], block_rows)
        spec = pl.BlockSpec((tm, lane), lambda i: (i, 0))
        out_bytes = rows * lane * out_isize
        out2 = pl.pallas_call(
            functools.partial(_mse_map_kernel, has_weight=has_weight,
                              loss_weight=float(loss_weight)),
            out_shape=jax.ShapeDtypeStruct((rows, lane), out_dtype),
            grid_spec=pltpu.PrefetchScalarGridSpec(
                num_scalar_prefetch=0,
                grid=(blocks,),
                in_specs=[spec] * len(inputs),
                out_specs=spec),
            compiler_params=pltpu.CompilerParams(
                dimension_semantics=("parallel",)),
            cost_estimate=pl.CostEstimate(flops=flops, transcendentals=0,
                                          bytes_accessed=in_bytes + out_bytes),
        )(*inputs)
        if padded:
            return out2.reshape(-1)[:n_elem].reshape(shape)
        return out2.reshape(shape)

    # ---------------- 'mean' / 'sum': partial sums per partition ----------------
    tm, blocks = _pick_tm(rows, lane, itemsizes, block_rows)
    num_parts = 2 if blocks >= 2 else 1
    # TODO(synk): force num_parts=1 on single-TensorCore chips (v5e/v6e) and use
    # CORE_PARALLEL on v7x once both TCs are confirmed engaged via xprof.
    steps = -(-blocks // num_parts)
    need_wsum = has_weight and reduction == "mean"
    ragged_last = (rows % tm) != 0
    need_mask = ragged_last or (num_parts * steps != blocks)

    if num_parts * steps != blocks:
        # Clamp so the DMA never walks past the array; the in-kernel mask
        # zeroes the (duplicate) contribution of any clamped block.
        in_map = lambda p, i: (jnp.minimum(p * steps + i, blocks - 1), 0)
    else:
        in_map = lambda p, i: (p * steps + i, 0)

    in_spec = pl.BlockSpec((tm, lane), in_map)
    out_cols = 2 if need_wsum else 1
    out_spec = pl.BlockSpec((1, out_cols), lambda p, i: (p, 0),
                            memory_space=pltpu.SMEM)

    scratch = [pltpu.VMEM((1, lane), jnp.float32)]
    if need_wsum:
        scratch.append(pltpu.VMEM((1, lane), jnp.float32))

    partials = pl.pallas_call(
        functools.partial(_mse_sum_kernel, tm=tm, n_rows=rows, steps=steps,
                          blocks=blocks, has_weight=has_weight,
                          need_wsum=need_wsum, need_mask=need_mask),
        out_shape=jax.ShapeDtypeStruct((num_parts, out_cols), jnp.float32),
        grid_spec=pltpu.PrefetchScalarGridSpec(
            num_scalar_prefetch=0,
            grid=(num_parts, steps),
            in_specs=[in_spec] * len(inputs),
            out_specs=out_spec,
            scratch_shapes=scratch),
        compiler_params=pltpu.CompilerParams(
            dimension_semantics=("parallel", "arbitrary")),
        cost_estimate=pl.CostEstimate(flops=flops, transcendentals=0,
                                      bytes_accessed=in_bytes + 4 * num_parts * out_cols),
    )(*inputs)

    total = jnp.sum(partials[:, 0])
    if reduction == "sum":
        return (total * loss_weight).astype(out_dtype)
    if not has_weight:
        return (total * (loss_weight / n_elem)).astype(out_dtype)
    # basicsr weight_reduce_loss: weighted 'mean' divides by the sum of the
    # weight broadcast to the loss shape (accumulated inside the kernel).
    w_total = jnp.sum(partials[:, 1])
    return (total / w_total * loss_weight).astype(out_dtype)


class MSELoss:
    """Thin wrapper mirroring the PyTorch module interface."""

    def __init__(self, loss_weight=1.0, reduction="mean"):
        if reduction not in ("none", "mean", "sum"):
            raise ValueError(f"Unsupported reduction mode: {reduction}")
        self.loss_weight = loss_weight
        self.reduction = reduction

    def __call__(self, pred, target, weight=None, **kwargs):
        return mse_loss(pred, target, weight=weight,
                        reduction=self.reduction, loss_weight=self.loss_weight)


# --------------------------------------------------------------------------
# Reference + tests
# --------------------------------------------------------------------------
def _reference(pred, target, weight=None, reduction="mean", loss_weight=1.0):
    loss = (pred.astype(jnp.float32) - target.astype(jnp.float32)) ** 2
    if weight is not None:
        loss = loss * weight.astype(jnp.float32)
    if reduction == "none":
        return loss * loss_weight
    if reduction == "sum":
        return loss.sum() * loss_weight
    if weight is None:
        return loss.mean() * loss_weight
    denom = weight.sum() * (loss.size / weight.size)
    return loss.sum() / denom * loss_weight


if __name__ == "__main__":
    key = jax.random.PRNGKey(0)
    k1, k2, k3, k4, k5 = jax.random.split(key, 5)

    def check(out, ref, name, rtol=1e-4, atol=1e-5):
        out = jax.block_until_ready(out)
        assert jnp.allclose(out, ref, rtol=rtol, atol=atol), (name, out, ref)

    # Small NCHW case matching the PyTorch module's documented shapes.
    B, C, H, W = 2, 4, 16, 16
    pred = jax.random.normal(k1, (B, C, H, W), dtype=jnp.float32)
    target = jax.random.normal(k2, (B, C, H, W), dtype=jnp.float32)
    weight = (jax.random.uniform(k3, (B, C, H, W)) > 0.3).astype(jnp.float32)
    weight_c1 = (jax.random.uniform(k3, (B, 1, H, W)) > 0.3).astype(jnp.float32)

    check(mse_loss(pred, target, reduction="mean"),
          _reference(pred, target, reduction="mean"), "mean")
    check(mse_loss(pred, target, weight, reduction="mean"),
          _reference(pred, target, weight, reduction="mean"), "mean_w")
    check(mse_loss(pred, target, weight_c1, reduction="mean"),
          _reference(pred, target, weight_c1, reduction="mean"), "mean_w_c1")
    check(mse_loss(pred, target, reduction="sum"),
          _reference(pred, target, reduction="sum"), "sum")
    check(mse_loss(pred, target, weight, reduction="sum"),
          _reference(pred, target, weight, reduction="sum"), "sum_w")
    check(MSELoss(loss_weight=2.0, reduction="none")(pred, target),
          _reference(pred, target, reduction="none", loss_weight=2.0), "none_lw")
    check(mse_loss(pred, target, weight, reduction="none"),
          _reference(pred, target, weight, reduction="none"), "none_w")

    # Non-128-multiple element count: copy-free (rows, trailing) view, no pad.
    p2 = jax.random.normal(k4, (3, 3, 13, 17), dtype=jnp.float32)
    t2 = jax.random.normal(k5, (3, 3, 13, 17), dtype=jnp.float32)
    check(mse_loss(p2, t2, reduction="mean"),
          _reference(p2, t2, reduction="mean"), "mean_misaligned")
    check(mse_loss(p2, t2, reduction="none"),
          _reference(p2, t2, reduction="none"), "none_misaligned")

    # Multi-block / two-partition / ragged-last / duplicate-block masking path
    # (block_rows forces small tiles so the small test still covers it).
    p3 = jax.random.normal(k4, (2, 4, 192, 176), dtype=jnp.float32)
    t3 = jax.random.normal(k5, (2, 4, 192, 176), dtype=jnp.float32)
    w3 = jax.random.uniform(k3, (2, 4, 192, 176), dtype=jnp.float32)
    check(mse_loss(p3, t3, reduction="mean", block_rows=256),
          _reference(p3, t3, reduction="mean"), "mean_multiblock")
    check(mse_loss(p3, t3, w3, reduction="mean", block_rows=256),
          _reference(p3, t3, w3, reduction="mean"), "mean_w_multiblock")

    print("KERNEL_OK")
</pallas_src>

<mosaic_0001>
module attributes {stable_mosaic.version = 11 : i64} {
  func.func @_mse_sum_kernel(%arg0: i32, %arg1: i32, %arg2: memref<16x128xf32, #tpu.memory_space<vmem>>, %arg3: memref<16x128xf32, #tpu.memory_space<vmem>>, %arg4: memref<1x1xf32, #tpu.memory_space<smem>>, %arg5: memref<1x128xf32, #tpu.memory_space<vmem>>) attributes {dimension_semantics = [#tpu.dimension_semantics<parallel>, #tpu.dimension_semantics<arbitrary>], iteration_bounds = array<i64: 1, 1>, scalar_prefetch = 0 : i64, scratch_operands = 1 : i64, tpu.core_type = #tpu.core_type<tc>, window_params = [{transform_indices = @transform_0, window_bounds = array<i64: 16, 128>}, {transform_indices = @transform_1, window_bounds = array<i64: 16, 128>}, {transform_indices = @transform_2, window_bounds = array<i64: 1, 1>}]} {
    %c0_i32 = arith.constant 0 : i32
    %0 = arith.cmpi eq, %arg1, %c0_i32 : i32
    %1 = arith.extui %0 : i1 to i32
    %c0_i32_0 = arith.constant 0 : i32
    %2 = arith.cmpi ne, %1, %c0_i32_0 : i32
    scf.if %2 {
      %cst_10 = arith.constant 0.000000e+00 : f32
      %15 = vector.broadcast %cst_10 : f32 to vector<1x128xf32>
      %c0_11 = arith.constant 0 : index
      %c0_12 = arith.constant 0 : index
      %16 = vector.load %arg5[%c0_11, %c0_12] : memref<1x128xf32, #tpu.memory_space<vmem>>, vector<1x128xf32>
      tpu.vector_store %arg5[%c0_11, %c0_12], %15 {strides = array<i32>} : memref<1x128xf32, #tpu.memory_space<vmem>>, vector<1x128xf32>,
    } else {
    }
    %c0 = arith.constant 0 : index
    %c0_1 = arith.constant 0 : index
    %3 = vector.load %arg2[%c0, %c0_1] : memref<16x128xf32, #tpu.memory_space<vmem>>, vector<16x128xf32>
    %c0_2 = arith.constant 0 : index
    %c0_3 = arith.constant 0 : index
    %4 = vector.load %arg3[%c0_2, %c0_3] : memref<16x128xf32, #tpu.memory_space<vmem>>, vector<16x128xf32>
    %5 = arith.subf %3, %4 : vector<16x128xf32>
    %6 = arith.mulf %5, %5 : vector<16x128xf32>
    %c0_4 = arith.constant 0 : index
    %c0_5 = arith.constant 0 : index
    %7 = vector.load %arg5[%c0_4, %c0_5] : memref<1x128xf32, #tpu.memory_space<vmem>>, vector<1x128xf32>
    %cst = arith.constant dense<0.000000e+00> : vector<128xf32>
    %8 = vector.multi_reduction <add>, %6, %cst [0] : vector<16x128xf32> to vector<128xf32>
    %9 = vector.shape_cast %8 : vector<128xf32> to vector<1x128xf32>
    %10 = arith.addf %7, %9 : vector<1x128xf32>
    %c0_6 = arith.constant 0 : index
    %c0_7 = arith.constant 0 : index
    %11 = vector.load %arg5[%c0_6, %c0_7] : memref<1x128xf32, #tpu.memory_space<vmem>>, vector<1x128xf32>
    tpu.vector_store %arg5[%c0_6, %c0_7], %10 {strides = array<i32>} : memref<1x128xf32, #tpu.memory_space<vmem>>, vector<1x128xf32>,
    %c0_i32_8 = arith.constant 0 : i32
    %12 = arith.cmpi eq, %arg1, %c0_i32_8 : i32
    %13 = arith.extui %12 : i1 to i32
    %c0_i32_9 = arith.constant 0 : i32
    %14 = arith.cmpi ne, %13, %c0_i32_9 : i32
    scf.if %14 {
      %c0_10 = arith.constant 0 : index
      %c0_11 = arith.constant 0 : index
      %15 = vector.load %arg5[%c0_10, %c0_11] : memref<1x128xf32, #tpu.memory_space<vmem>>, vector<1x128xf32>
      %16 = vector.shape_cast %15 : vector<1x128xf32> to vector<1x1x128xf32>
      %cst_12 = arith.constant dense<0.000000e+00> : vector<1xf32>
      %17 = vector.multi_reduction <add>, %16, %cst_12 [1, 2] : vector<1x1x128xf32> to vector<1xf32>
      %18 = vector.shape_cast %17 : vector<1xf32> to vector<1x1x1xf32>
      %19 = vector.extract %18[0, 0, 0] : f32 from vector<1x1x1xf32>
      %c0_13 = arith.constant 0 : index
      %c0_14 = arith.constant 0 : index
      %20 = memref.load %arg4[%c0_13, %c0_14] : memref<1x1xf32, #tpu.memory_space<smem>>
      memref.store %19, %arg4[%c0_13, %c0_14] : memref<1x1xf32, #tpu.memory_space<smem>>
    } else {
    }
    return
  }
  func.func @transform_0(%arg0: i32, %arg1: i32) -> (i32, i32) {
    %c1_i32 = arith.constant 1 : i32
    %0 = arith.muli %arg0, %c1_i32 : i32
    %1 = arith.addi %0, %arg1 : i32
    %c0_i32 = arith.constant 0 : i32
    %c0_i32_0 = arith.constant 0 : i32
    return %1, %c0_i32 : i32, i32
  }
  func.func @transform_1(%arg0: i32, %arg1: i32) -> (i32, i32) {
    %c1_i32 = arith.constant 1 : i32
    %0 = arith.muli %arg0, %c1_i32 : i32
    %1 = arith.addi %0, %arg1 : i32
    %c0_i32 = arith.constant 0 : i32
    %c0_i32_0 = arith.constant 0 : i32
    return %1, %c0_i32 : i32, i32
  }
  func.func @transform_2(%arg0: i32, %arg1: i32) -> (i32, i32) {
    %c0_i32 = arith.constant 0 : i32
    %c0_i32_0 = arith.constant 0 : i32
    return %arg0, %c0_i32 : i32, i32
  }
}

</mosaic_0001>

<llo_original>
// kernel: tpu_custom_call.1
$region0: #{tpu_custom_call.1}
  #allocation0 [shape = 'u32[]', space=smem, size = 0x4, offset = 0x4, fixed_abs, tag = 'smem constant byte address 0x4 - core index']
  #allocation1 [shape = 'u32[144,128]{1,0:T(1,128)}', space=vmem, size = 0x12000, scoped, tag = 'internal scratch']
  #allocation2 [shape = 'f32[1,128]{1,0:T(1,128)}', space=vmem, size = 0x200, scoped, tag = 'scratch operand']
  %s0 = inlined_call_operand.hbm [shape: f32[16,128], index: 0, kind: input, shape index: {}]
  %s1 = inlined_call_operand.hbm [shape: f32[16,128], index: 1, kind: input, shape index: {}]
  %s2 = inlined_call_operand.hbm [shape: f32[1,1], index: 2, kind: output, shape index: {}]
  %s3 = sld [smem:[#allocation0]]
  $region34: #{tpu_custom_call.1} parent=0
    _
  %s5 = ssub.s32 1, %s3
  %s6 = scalar_select 0, %s5, %s3
  $region1: #{tpu_custom_call.1} parent=0
    #allocation3 [shape = 'u8[8192]{0}', space=vmem, size = 0x2000, scoped, tag = 'input window, operand 0, single buffered']
    #allocation4 [shape = 's32[1]{0}', space=sflag, size = 0x4, scoped, tag = 'scoped memory for tpu_custom_call.1']
    #allocation5 [shape = 's32[1]{0}', space=sflag, size = 0x4, scoped, tag = 'scoped memory for tpu_custom_call.1']
    #allocation6 [shape = 'u8[8192]{0}', space=vmem, size = 0x2000, scoped, tag = 'input window, operand 1, single buffered']
    #allocation7 [shape = 's32[1]{0}', space=sflag, size = 0x4, scoped, tag = 'scoped memory for tpu_custom_call.1']
    #allocation8 [shape = 'u8[512]{0}', space=smem, size = 0x200, scoped, tag = 'output window, operand 0, single buffered']
    %7 = vsyncpa [#allocation4], 0
    %8 = vsyncpa [#allocation7], 0
    %9 = vsyncpa [#allocation5], 0
    // Predicated region
    $region2: #{tpu_custom_call.1} parent=1 // pred_check
      _
    $region3: #{tpu_custom_call.1} parent=1 // pred_check_branch
      %11 = sbr.rel (0) target = $region5
    $region4: #{tpu_custom_call.1} parent=1 // pred_region
      %s12 = sadd.s32 0, 0
      %s13 = smul.u32 2, %s12
      %s15 = ssub.s32 256, 256
      %16 = vsyncadd [#allocation4], %s15
      %s17 = smul.addr %s13, 128
      %s18 = scalar_lea.hbm %s0, %s17
      %s19 = sshll.u32 [#allocation3], 4
      %s20 = int_to_ptr.vmem [resolvable:$true] %s19
      %25 = dma.hbm_to_vmem [thread:$0]  %s18, 256, %s20, [#allocation4], 128, 128, 8
    $region5: #{tpu_custom_call.1} parent=1 // pred_fallthru
      _
    // Predicated region
    $region6: #{tpu_custom_call.1} parent=1 // pred_check
      _
    $region7: #{tpu_custom_call.1} parent=1 // pred_check_branch
      %27 = sbr.rel (0) target = $region9
    $region8: #{tpu_custom_call.1} parent=1 // pred_region
      %s28 = sadd.s32 0, 0
      %s29 = smul.u32 2, %s28
      %s31 = ssub.s32 256, 256
      %32 = vsyncadd [#allocation7], %s31
      %s33 = smul.addr %s29, 128
      %s34 = scalar_lea.hbm %s1, %s33
      %s35 = sshll.u32 [#allocation6], 4
      %s36 = int_to_ptr.vmem [resolvable:$true] %s35
      %41 = dma.hbm_to_vmem [thread:$0]  %s34, 256, %s36, [#allocation7], 128, 128, 8
    $region9: #{tpu_custom_call.1} parent=1 // pred_fallthru
      _
    // Predicated region
    $region10: #{tpu_custom_call.1} parent=1 // pred_check
      _
    $region11: #{tpu_custom_call.1} parent=1 // pred_check_branch
      %43 = sbr.rel (0) target = $region13
    $region12: #{tpu_custom_call.1} parent=1 // pred_region
      %44 = dma.done [#allocation4], 256
    $region13: #{tpu_custom_call.1} parent=1 // pred_fallthru
      _
    // Predicated region
    $region14: #{tpu_custom_call.1} parent=1 // pred_check
      _
    $region15: #{tpu_custom_call.1} parent=1 // pred_check_branch
      %46 = sbr.rel (0) target = $region17
    $region16: #{tpu_custom_call.1} parent=1 // pred_region
      %47 = dma.done [#allocation7], 256
    $region17: #{tpu_custom_call.1} parent=1 // pred_fallthru
      _
    %s48 = sadd.s32 0, 0
    %s49 = smul.u32 2, %s48
    %s50 = sadd.s32 0, 0
    %s51 = smul.u32 2, %s50
    %p52 = scmp.eq.s32.totalorder 0, 0
    // Predicated region
    $region18: #{tpu_custom_call.1} parent=1 // pred_check
      %p53 = pneg %p52
    $region19: #{tpu_custom_call.1} parent=1 // pred_check_branch
      %55 = sbr.rel (%p53) target = $region21
    $region20: #{tpu_custom_call.1} parent=1 // pred_region
      %56 = vst [vmem:[#allocation2] sm:$0x1] 0.0
    $region21: #{tpu_custom_call.1} parent=1 // pred_fallthru
      _
    %v57 = vld [vmem:[#allocation3] sm:$0xff]
    %v58 = vld [vmem:[#allocation3 + $0x8] sm:$0xff]
    %v59 = vld [vmem:[#allocation6] sm:$0xff]
    %v60 = vld [vmem:[#allocation6 + $0x8] sm:$0xff]
    %v61 = vsub.f32 %v57, %v59
    %v62 = vsub.f32 %v58, %v60
    %v63 = vmul.f32 %v61, %v61
    %v64 = vmul.f32 %v62, %v62
    %v65 = vld [vmem:[#allocation2] sm:$0x1]
    %v66 = vadd.f32 %v63, %v64
    %v67 = vrot.slane %v66, 4
    %v68 = vadd.f32 %v66, %v67
    %v69 = vrot.slane %v68, 2
    %v70 = vadd.f32 %v68, %v69
    %v71 = vrot.slane %v70, 1
    %v72 = vadd.f32 %v70, %v71
    %v73 = vadd.f32 %v65, %v72
    %74 = vst [vmem:[#allocation2] sm:$0x1] %v73
    // Predicated region
    $region22: #{tpu_custom_call.1} parent=1 // pred_check
      %p75 = pneg %p52
    $region23: #{tpu_custom_call.1} parent=1 // pred_check_branch
      %77 = sbr.rel (%p75) target = $region25
    $region24: #{tpu_custom_call.1} parent=1 // pred_region
      %v78 = vld [vmem:[#allocation2] sm:$0x1]
      %vm79 = vcmask 1040384
      %v80 = vsel %vm79, %v78, 0.0
      %81 = vadd.xlane.f32.xlu0 %v80
      %v82 = vpop.xlane.xlu0 %81
      %v83 = vrot.slane %v82, 4
      %v84 = vadd.f32 %v82, %v83
      %v85 = vrot.slane %v84, 2
      %v86 = vadd.f32 %v84, %v85
      %v87 = vrot.slane %v86, 1
      %v88 = vadd.f32 %v86, %v87
      %s89 = vtos %v88
      %s90 = scalar_lea.smem [#allocation8], 0
      %91 = sst [smem:[%s90]] %s89
    $region25: #{tpu_custom_call.1} parent=1 // pred_fallthru
      _
    // Predicated region
    $region26: #{tpu_custom_call.1} parent=1 // pred_check
      _
    $region27: #{tpu_custom_call.1} parent=1 // pred_check_branch
      %93 = sbr.rel (0) target = $region29
    $region28: #{tpu_custom_call.1} parent=1 // pred_region
      %s95 = ssub.s32 16, 16
      %96 = vsyncadd [#allocation5], %s95
      %99 = dma.smem_to_hbm [#allocation8], 16, %s2, [#allocation5]
    $region29: #{tpu_custom_call.1} parent=1 // pred_fallthru
      _
    // Predicated region
    $region30: #{tpu_custom_call.1} parent=1 // pred_check
      _
    $region31: #{tpu_custom_call.1} parent=1 // pred_check_branch
      %101 = sbr.rel (0) target = $region33
    $region32: #{tpu_custom_call.1} parent=1 // pred_region
      %102 = dma.done [#allocation5], 16
    $region33: #{tpu_custom_call.1} parent=1 // pred_fallthru
      _
    %103 = sfence
    %104 = vsyncpa [#allocation4], 1
    %105 = vsyncpa [#allocation7], 1
    %106 = vsyncpa [#allocation5], 1

</llo_original>
